<compile_context>
chip_gen: v7x
topology: tpu7x:2x2x1
jax: 0.10.0
libtpu: 0.0.40
codegen_flags: <defaults>
</compile_context>

<pallas_src>
import jax
import jax.numpy as jnp
from jax import lax
from jax.experimental import pallas as pl
from jax.experimental.pallas import tpu as pltpu

CHUNK_ROWS = 64          # 64 x 128 = 8192 points per register-blocked chunk
MAX_TILE_ROWS = 1024     # 1024 x 128 = 131072 points (1 MiB f32) per grid step
LINE_UNROLL_MAX = 32     # fully unroll the line loop up to this many segments
LINE_GROUP = 8           # manual unroll factor for the large-T fori_loop path


def _round_up(x, m):
    return ((x + m - 1) // m) * m


def _choose_tiling(n_points):
    """Pick (tile_rows, chunk_rows, grid) -- all static Python ints."""
    rows = _round_up(max(pl.cdiv(n_points, 128), 1), 8)
    if rows <= CHUNK_ROWS:
        return rows, rows, 1
    rows = _round_up(rows, CHUNK_ROWS)
    # Aim for >= 2 grid steps (v7x: 2 TensorCores share the "parallel" axis)
    # while keeping each step big enough to amortize per-step overhead.
    tile_rows = min(MAX_TILE_ROWS, _round_up(pl.cdiv(rows, 2), CHUNK_ROWS))
    grid = pl.cdiv(rows, tile_rows)
    return tile_rows, CHUNK_ROWS, grid


def _make_kernel(n_points, n_lines, tile_rows, chunk_rows):
    n_chunks = tile_rows // chunk_rows
    tile_pts = tile_rows * 128
    if n_lines <= LINE_UNROLL_MAX:
        n_grouped = 0
    else:
        n_grouped = (n_lines // LINE_GROUP) * LINE_GROUP

    def kernel(tab_ref, pts_ref, out_ref):
        # tab_ref: (5*T,) f32 SMEM  [p1x | p1y | dx | dy | inv_seg2]
        # pts_ref: (2, tile_rows, 128) f32 VMEM  (x-plane, y-plane)
        # out_ref: (8, 128) f32 VMEM  per-grid-step partial-sum slab
        tile_base = pl.program_id(0) * tile_pts

        # hoisted, chunk-loop-invariant local point index (iota is not CSE'd)
        local_idx = (lax.broadcasted_iota(jnp.int32, (chunk_rows, 128), 0) * 128
                     + lax.broadcasted_iota(jnp.int32, (chunk_rows, 128), 1))

        def line_dist_sq(t, px, py):
            # clamped-projection squared distance (non-negative by construction)
            p1x = tab_ref[t]
            p1y = tab_ref[n_lines + t]
            dx = tab_ref[2 * n_lines + t]
            dy = tab_ref[3 * n_lines + t]
            inv_seg2 = tab_ref[4 * n_lines + t]
            p1mx = px - p1x
            p1my = py - p1y
            dot = dx * p1mx + dy * p1my
            tc = jnp.clip(dot * inv_seg2, 0.0, 1.0)
            hx = p1mx - tc * dx
            hy = p1my - tc * dy
            return hx * hx + hy * hy

        def chunk_body(c, acc):
            r0 = pl.multiple_of(c * chunk_rows, chunk_rows)
            px = pts_ref[0, pl.ds(r0, chunk_rows), :]
            py = pts_ref[1, pl.ds(r0, chunk_rows), :]

            dmin = jnp.full((chunk_rows, 128), jnp.inf, dtype=jnp.float32)
            if n_grouped:
                def group_body(g, dm):
                    t0 = g * LINE_GROUP
                    for k in range(LINE_GROUP):           # manual unroll by 8
                        dm = jnp.minimum(dm, line_dist_sq(t0 + k, px, py))
                    return dm
                dmin = lax.fori_loop(0, n_grouped // LINE_GROUP,
                                     group_body, dmin)
            for t in range(n_grouped, n_lines):            # static (remainder)
                dmin = jnp.minimum(dmin, line_dist_sq(t, px, py))

            # mask padded tail points; a single sqrt per point on the minimum
            limit = n_points - (tile_base + r0 * 128)
            d = jnp.where(local_idx < limit, jnp.sqrt(dmin), 0.0)
            # fold into one (8,128) vreg slab -- sublane-aligned VPU adds only
            return acc + jnp.sum(d.reshape(chunk_rows // 8, 8, 128), axis=0)

        acc = lax.fori_loop(0, n_chunks, chunk_body,
                            jnp.zeros((8, 128), jnp.float32))
        out_ref[...] = acc

    return kernel


def dist_to_lines_2d(points, lines):
    """points: (N, 2), lines: (T, 2, 2) -> scalar f32."""
    n = points.shape[0]
    n_lines = lines.shape[0]
    tile_rows, chunk_rows, grid = _choose_tiling(n)
    n_rows_pad = grid * tile_rows
    n_pad = n_rows_pad * 128

    # coords-major, lane-dense point planes: (2, rows, 128); the flattened
    # (row, lane) index equals the point index (used for tail masking).
    # TODO(synk): accept a pre-transposed (2, N) coords-major input upstream
    # to remove this single transpose+pad pass entirely.
    pts = points.astype(jnp.float32).T
    pts = jnp.pad(pts, ((0, 0), (0, n_pad - n))).reshape(2, n_rows_pad, 128)

    # per-line invariants, field-major flat SMEM table (no 2-D SMEM padding)
    p1 = lines[:, 0, :].astype(jnp.float32)
    p2 = lines[:, 1, :].astype(jnp.float32)
    d = p2 - p1
    seg2 = jnp.sum(d * d, axis=1)
    inv_seg2 = jnp.where(seg2 > 0.0, 1.0 / jnp.where(seg2 > 0.0, seg2, 1.0), 0.0)
    tab = jnp.concatenate([p1[:, 0], p1[:, 1], d[:, 0], d[:, 1], inv_seg2])

    partials = pl.pallas_call(
        _make_kernel(n, n_lines, tile_rows, chunk_rows),
        out_shape=jax.ShapeDtypeStruct((grid, 8, 128), jnp.float32),
        grid_spec=pltpu.PrefetchScalarGridSpec(
            num_scalar_prefetch=0,
            grid=(grid,),
            in_specs=[
                pl.BlockSpec(memory_space=pltpu.MemorySpace.SMEM),      # (5T,)
                pl.BlockSpec((2, tile_rows, 128), lambda i: (0, i, 0)),
            ],
            out_specs=pl.BlockSpec((None, 8, 128), lambda i: (i, 0, 0)),
        ),
        compiler_params=pltpu.CompilerParams(
            dimension_semantics=("parallel",)),
    )(tab, pts)

    # tiny final reduce over grid-many (8,128) partial-sum slabs
    return jnp.sum(partials)


def _reference(points, lines):
    """Pure-JAX transliteration of the PyTorch forward (for verification)."""
    P1 = lines[:, 0, :]
    P2 = lines[:, 1, :]
    P1P2 = P2 - P1
    seg2 = jnp.sum(P1P2 ** 2, axis=1)
    P1M = points[:, None, :] - P1
    P2M = points[:, None, :] - P2
    dot = jnp.einsum("td,ntd->nt", P1P2, P1M)
    dist_closest = jnp.minimum(jnp.sqrt(jnp.sum(P1M ** 2, -1)),
                               jnp.sqrt(jnp.sum(P2M ** 2, -1)))
    H = P1 + (dot / seg2)[..., None] * P1P2
    MH = H - points[:, None, :]
    dist_proj = jnp.sqrt(jnp.sum(MH ** 2, -1))
    dist = jnp.where((dot > 0) & (dot < seg2), dist_proj, dist_closest)
    return jnp.sum(jnp.min(dist, axis=1))


if __name__ == "__main__":
    key = jax.random.PRNGKey(0)
    k1, k2, k3, k4 = jax.random.split(key, 4)

    # Case 1: small problem, single tile, fully-unrolled line loop.
    pts_a = jax.random.normal(k1, (200, 2), dtype=jnp.float32) * 2.0
    lin_a = jax.random.normal(k2, (4, 2, 2), dtype=jnp.float32) * 3.0
    got_a = jax.block_until_ready(dist_to_lines_2d(pts_a, lin_a))
    want_a = jax.block_until_ready(_reference(pts_a, lin_a))
    assert jnp.allclose(got_a, want_a, rtol=1e-4, atol=1e-3), (got_a, want_a)

    # Case 2: multi-tile grid, multi-chunk inner loop, fori-loop line path,
    # a degenerate (zero-length) segment, and points exactly on an endpoint /
    # on a segment midpoint (exercises masking + boundary behavior).
    pts_b = jax.random.normal(k3, (40000, 2), dtype=jnp.float32) * 4.0
    lin_b = jax.random.normal(k4, (40, 2, 2), dtype=jnp.float32) * 3.0
    lin_b = lin_b.at[5, 1, :].set(lin_b[5, 0, :])                      # degenerate
    pts_b = pts_b.at[0].set(lin_b[0, 1, :])                            # == P2
    pts_b = pts_b.at[1].set(0.5 * (lin_b[1, 0, :] + lin_b[1, 1, :]))   # midpoint
    got_b = jax.block_until_ready(dist_to_lines_2d(pts_b, lin_b))
    want_b = jax.block_until_ready(_reference(pts_b, lin_b))
    assert jnp.allclose(got_b, want_b, rtol=1e-4, atol=1e-1), (got_b, want_b)

    print("KERNEL_OK")
</pallas_src>

<mosaic_0001>
module attributes {stable_mosaic.version = 11 : i64} {
  func.func @kernel(%arg0: i32, %arg1: memref<20xf32, #tpu.memory_space<smem>>, %arg2: memref<2x8x128xf32, #tpu.memory_space<vmem>>, %arg3: memref<1x8x128xf32, #tpu.memory_space<vmem>>) attributes {dimension_semantics = [#tpu.dimension_semantics<parallel>], iteration_bounds = array<i64: 1>, scalar_prefetch = 0 : i64, scratch_operands = 0 : i64, tpu.core_type = #tpu.core_type<tc>, window_params = [{transform_indices = @transform_0, window_bounds = array<i64: 20>}, {transform_indices = @transform_1, window_bounds = array<i64: 2, 8, 128>}, {transform_indices = @transform_2, window_bounds = array<i64: 1, 8, 128>}]} {
    %c1024_i32 = arith.constant 1024 : i32
    %0 = arith.muli %arg0, %c1024_i32 : i32
    %1 = tpu.iota {dimensions = array<i32: 0>} : vector<8x128xi32>
    %c128_i32 = arith.constant 128 : i32
    %2 = vector.broadcast %c128_i32 : i32 to vector<8x128xi32>
    %3 = arith.muli %1, %2 : vector<8x128xi32>
    %4 = tpu.iota {dimensions = array<i32: 1>} : vector<8x128xi32>
    %5 = arith.addi %3, %4 : vector<8x128xi32>
    %cst = arith.constant 0.000000e+00 : f32
    %6 = vector.broadcast %cst : f32 to vector<8x128xf32>
    %c0_i32 = arith.constant 0 : i32
    %c8_i32 = arith.constant 8 : i32
    %7 = arith.muli %c0_i32, %c8_i32 : i32
    %8 = tpu.assume_multiple %7, 8 : i32
    %c0 = arith.constant 0 : index
    %9 = arith.index_cast %8 : i32 to index
    %c0_0 = arith.constant 0 : index
    %10 = vector.load %arg2[%c0, %9, %c0_0] : memref<2x8x128xf32, #tpu.memory_space<vmem>>, vector<1x8x128xf32>
    %11 = vector.shape_cast %10 : vector<1x8x128xf32> to vector<8x128xf32>
    %c1 = arith.constant 1 : index
    %12 = arith.index_cast %8 : i32 to index
    %c0_1 = arith.constant 0 : index
    %13 = vector.load %arg2[%c1, %12, %c0_1] : memref<2x8x128xf32, #tpu.memory_space<vmem>>, vector<1x8x128xf32>
    %14 = vector.shape_cast %13 : vector<1x8x128xf32> to vector<8x128xf32>
    %cst_2 = arith.constant 0x7F800000 : f32
    %15 = vector.broadcast %cst_2 : f32 to vector<8x128xf32>
    %c0_3 = arith.constant 0 : index
    %16 = memref.load %arg1[%c0_3] : memref<20xf32, #tpu.memory_space<smem>>
    %c4 = arith.constant 4 : index
    %17 = memref.load %arg1[%c4] : memref<20xf32, #tpu.memory_space<smem>>
    %c8 = arith.constant 8 : index
    %18 = memref.load %arg1[%c8] : memref<20xf32, #tpu.memory_space<smem>>
    %c12 = arith.constant 12 : index
    %19 = memref.load %arg1[%c12] : memref<20xf32, #tpu.memory_space<smem>>
    %c16 = arith.constant 16 : index
    %20 = memref.load %arg1[%c16] : memref<20xf32, #tpu.memory_space<smem>>
    %21 = vector.broadcast %16 : f32 to vector<8x128xf32>
    %22 = arith.subf %11, %21 : vector<8x128xf32>
    %23 = vector.broadcast %17 : f32 to vector<8x128xf32>
    %24 = arith.subf %14, %23 : vector<8x128xf32>
    %25 = vector.broadcast %18 : f32 to vector<8x128xf32>
    %26 = arith.mulf %25, %22 : vector<8x128xf32>
    %27 = vector.broadcast %19 : f32 to vector<8x128xf32>
    %28 = arith.mulf %27, %24 : vector<8x128xf32>
    %29 = arith.addf %26, %28 : vector<8x128xf32>
    %30 = vector.broadcast %20 : f32 to vector<8x128xf32>
    %31 = arith.mulf %29, %30 : vector<8x128xf32>
    %cst_4 = arith.constant 0.000000e+00 : f32
    %cst_5 = arith.constant 1.000000e+00 : f32
    %32 = vector.broadcast %cst_4 : f32 to vector<8x128xf32>
    %33 = arith.maximumf %32, %31 : vector<8x128xf32>
    %34 = vector.broadcast %cst_5 : f32 to vector<8x128xf32>
    %35 = arith.minimumf %34, %33 : vector<8x128xf32>
    %36 = vector.broadcast %18 : f32 to vector<8x128xf32>
    %37 = arith.mulf %35, %36 : vector<8x128xf32>
    %38 = arith.subf %22, %37 : vector<8x128xf32>
    %39 = vector.broadcast %19 : f32 to vector<8x128xf32>
    %40 = arith.mulf %35, %39 : vector<8x128xf32>
    %41 = arith.subf %24, %40 : vector<8x128xf32>
    %42 = arith.mulf %38, %38 : vector<8x128xf32>
    %43 = arith.mulf %41, %41 : vector<8x128xf32>
    %44 = arith.addf %42, %43 : vector<8x128xf32>
    %45 = arith.minimumf %15, %44 : vector<8x128xf32>
    %c1_6 = arith.constant 1 : index
    %46 = memref.load %arg1[%c1_6] : memref<20xf32, #tpu.memory_space<smem>>
    %c5 = arith.constant 5 : index
    %47 = memref.load %arg1[%c5] : memref<20xf32, #tpu.memory_space<smem>>
    %c9 = arith.constant 9 : index
    %48 = memref.load %arg1[%c9] : memref<20xf32, #tpu.memory_space<smem>>
    %c13 = arith.constant 13 : index
    %49 = memref.load %arg1[%c13] : memref<20xf32, #tpu.memory_space<smem>>
    %c17 = arith.constant 17 : index
    %50 = memref.load %arg1[%c17] : memref<20xf32, #tpu.memory_space<smem>>
    %51 = vector.broadcast %46 : f32 to vector<8x128xf32>
    %52 = arith.subf %11, %51 : vector<8x128xf32>
    %53 = vector.broadcast %47 : f32 to vector<8x128xf32>
    %54 = arith.subf %14, %53 : vector<8x128xf32>
    %55 = vector.broadcast %48 : f32 to vector<8x128xf32>
    %56 = arith.mulf %55, %52 : vector<8x128xf32>
    %57 = vector.broadcast %49 : f32 to vector<8x128xf32>
    %58 = arith.mulf %57, %54 : vector<8x128xf32>
    %59 = arith.addf %56, %58 : vector<8x128xf32>
    %60 = vector.broadcast %50 : f32 to vector<8x128xf32>
    %61 = arith.mulf %59, %60 : vector<8x128xf32>
    %cst_7 = arith.constant 0.000000e+00 : f32
    %cst_8 = arith.constant 1.000000e+00 : f32
    %62 = vector.broadcast %cst_7 : f32 to vector<8x128xf32>
    %63 = arith.maximumf %62, %61 : vector<8x128xf32>
    %64 = vector.broadcast %cst_8 : f32 to vector<8x128xf32>
    %65 = arith.minimumf %64, %63 : vector<8x128xf32>
    %66 = vector.broadcast %48 : f32 to vector<8x128xf32>
    %67 = arith.mulf %65, %66 : vector<8x128xf32>
    %68 = arith.subf %52, %67 : vector<8x128xf32>
    %69 = vector.broadcast %49 : f32 to vector<8x128xf32>
    %70 = arith.mulf %65, %69 : vector<8x128xf32>
    %71 = arith.subf %54, %70 : vector<8x128xf32>
    %72 = arith.mulf %68, %68 : vector<8x128xf32>
    %73 = arith.mulf %71, %71 : vector<8x128xf32>
    %74 = arith.addf %72, %73 : vector<8x128xf32>
    %75 = arith.minimumf %45, %74 : vector<8x128xf32>
    %c2 = arith.constant 2 : index
    %76 = memref.load %arg1[%c2] : memref<20xf32, #tpu.memory_space<smem>>
    %c6 = arith.constant 6 : index
    %77 = memref.load %arg1[%c6] : memref<20xf32, #tpu.memory_space<smem>>
    %c10 = arith.constant 10 : index
    %78 = memref.load %arg1[%c10] : memref<20xf32, #tpu.memory_space<smem>>
    %c14 = arith.constant 14 : index
    %79 = memref.load %arg1[%c14] : memref<20xf32, #tpu.memory_space<smem>>
    %c18 = arith.constant 18 : index
    %80 = memref.load %arg1[%c18] : memref<20xf32, #tpu.memory_space<smem>>
    %81 = vector.broadcast %76 : f32 to vector<8x128xf32>
    %82 = arith.subf %11, %81 : vector<8x128xf32>
    %83 = vector.broadcast %77 : f32 to vector<8x128xf32>
    %84 = arith.subf %14, %83 : vector<8x128xf32>
    %85 = vector.broadcast %78 : f32 to vector<8x128xf32>
    %86 = arith.mulf %85, %82 : vector<8x128xf32>
    %87 = vector.broadcast %79 : f32 to vector<8x128xf32>
    %88 = arith.mulf %87, %84 : vector<8x128xf32>
    %89 = arith.addf %86, %88 : vector<8x128xf32>
    %90 = vector.broadcast %80 : f32 to vector<8x128xf32>
    %91 = arith.mulf %89, %90 : vector<8x128xf32>
    %cst_9 = arith.constant 0.000000e+00 : f32
    %cst_10 = arith.constant 1.000000e+00 : f32
    %92 = vector.broadcast %cst_9 : f32 to vector<8x128xf32>
    %93 = arith.maximumf %92, %91 : vector<8x128xf32>
    %94 = vector.broadcast %cst_10 : f32 to vector<8x128xf32>
    %95 = arith.minimumf %94, %93 : vector<8x128xf32>
    %96 = vector.broadcast %78 : f32 to vector<8x128xf32>
    %97 = arith.mulf %95, %96 : vector<8x128xf32>
    %98 = arith.subf %82, %97 : vector<8x128xf32>
    %99 = vector.broadcast %79 : f32 to vector<8x128xf32>
    %100 = arith.mulf %95, %99 : vector<8x128xf32>
    %101 = arith.subf %84, %100 : vector<8x128xf32>
    %102 = arith.mulf %98, %98 : vector<8x128xf32>
    %103 = arith.mulf %101, %101 : vector<8x128xf32>
    %104 = arith.addf %102, %103 : vector<8x128xf32>
    %105 = arith.minimumf %75, %104 : vector<8x128xf32>
    %c3 = arith.constant 3 : index
    %106 = memref.load %arg1[%c3] : memref<20xf32, #tpu.memory_space<smem>>
    %c7 = arith.constant 7 : index
    %107 = memref.load %arg1[%c7] : memref<20xf32, #tpu.memory_space<smem>>
    %c11 = arith.constant 11 : index
    %108 = memref.load %arg1[%c11] : memref<20xf32, #tpu.memory_space<smem>>
    %c15 = arith.constant 15 : index
    %109 = memref.load %arg1[%c15] : memref<20xf32, #tpu.memory_space<smem>>
    %c19 = arith.constant 19 : index
    %110 = memref.load %arg1[%c19] : memref<20xf32, #tpu.memory_space<smem>>
    %111 = vector.broadcast %106 : f32 to vector<8x128xf32>
    %112 = arith.subf %11, %111 : vector<8x128xf32>
    %113 = vector.broadcast %107 : f32 to vector<8x128xf32>
    %114 = arith.subf %14, %113 : vector<8x128xf32>
    %115 = vector.broadcast %108 : f32 to vector<8x128xf32>
    %116 = arith.mulf %115, %112 : vector<8x128xf32>
    %117 = vector.broadcast %109 : f32 to vector<8x128xf32>
    %118 = arith.mulf %117, %114 : vector<8x128xf32>
    %119 = arith.addf %116, %118 : vector<8x128xf32>
    %120 = vector.broadcast %110 : f32 to vector<8x128xf32>
    %121 = arith.mulf %119, %120 : vector<8x128xf32>
    %cst_11 = arith.constant 0.000000e+00 : f32
    %cst_12 = arith.constant 1.000000e+00 : f32
    %122 = vector.broadcast %cst_11 : f32 to vector<8x128xf32>
    %123 = arith.maximumf %122, %121 : vector<8x128xf32>
    %124 = vector.broadcast %cst_12 : f32 to vector<8x128xf32>
    %125 = arith.minimumf %124, %123 : vector<8x128xf32>
    %126 = vector.broadcast %108 : f32 to vector<8x128xf32>
    %127 = arith.mulf %125, %126 : vector<8x128xf32>
    %128 = arith.subf %112, %127 : vector<8x128xf32>
    %129 = vector.broadcast %109 : f32 to vector<8x128xf32>
    %130 = arith.mulf %125, %129 : vector<8x128xf32>
    %131 = arith.subf %114, %130 : vector<8x128xf32>
    %132 = arith.mulf %128, %128 : vector<8x128xf32>
    %133 = arith.mulf %131, %131 : vector<8x128xf32>
    %134 = arith.addf %132, %133 : vector<8x128xf32>
    %135 = arith.minimumf %105, %134 : vector<8x128xf32>
    %c128_i32_13 = arith.constant 128 : i32
    %136 = arith.muli %8, %c128_i32_13 : i32
    %137 = arith.addi %0, %136 : i32
    %c200_i32 = arith.constant 200 : i32
    %138 = arith.subi %c200_i32, %137 : i32
    %139 = vector.broadcast %138 : i32 to vector<8x128xi32>
    %140 = arith.cmpi slt, %5, %139 : vector<8x128xi32>
    %141 = math.sqrt %135 : vector<8x128xf32>
    %cst_14 = arith.constant 0.000000e+00 : f32
    %142 = vector.broadcast %cst_14 : f32 to vector<8x128xf32>
    %143 = arith.select %140, %141, %142 : vector<8x128xi1>, vector<8x128xf32>
    %144 = vector.shape_cast %143 : vector<8x128xf32> to vector<1x8x128xf32>
    %cst_15 = arith.constant dense<0.000000e+00> : vector<8x128xf32>
    %145 = vector.multi_reduction <add>, %144, %cst_15 [0] : vector<1x8x128xf32> to vector<8x128xf32>
    %146 = arith.addf %6, %145 : vector<8x128xf32>
    %c1_i32 = arith.constant 1 : i32
    %c0_16 = arith.constant 0 : index
    %c0_17 = arith.constant 0 : index
    %c0_18 = arith.constant 0 : index
    %147 = vector.load %arg3[%c0_16, %c0_17, %c0_18] : memref<1x8x128xf32, #tpu.memory_space<vmem>>, vector<1x8x128xf32>
    %148 = vector.shape_cast %147 : vector<1x8x128xf32> to vector<8x128xf32>
    %149 = vector.shape_cast %146 : vector<8x128xf32> to vector<1x8x128xf32>
    tpu.vector_store %arg3[%c0_16, %c0_17, %c0_18], %149 {strides = array<i32>} : memref<1x8x128xf32, #tpu.memory_space<vmem>>, vector<1x8x128xf32>,
    return
  }
  func.func @transform_0(%arg0: i32) -> i32 {
    %c0_i32 = arith.constant 0 : i32
    %c0_i32_0 = arith.constant 0 : i32
    return %c0_i32 : i32
  }
  func.func @transform_1(%arg0: i32) -> (i32, i32, i32) {
    %c0_i32 = arith.constant 0 : i32
    %c0_i32_0 = arith.constant 0 : i32
    %c0_i32_1 = arith.constant 0 : i32
    return %c0_i32, %arg0, %c0_i32_0 : i32, i32, i32
  }
  func.func @transform_2(%arg0: i32) -> (i32, i32, i32) {
    %c0_i32 = arith.constant 0 : i32
    %c0_i32_0 = arith.constant 0 : i32
    %c0_i32_1 = arith.constant 0 : i32
    return %arg0, %c0_i32, %c0_i32_0 : i32, i32, i32
  }
}

</mosaic_0001>

<llo_original>
// kernel: tpu_custom_call.1
$region0: #{tpu_custom_call.1}
  #allocation0 [shape = 'u32[]', space=smem, size = 0x4, offset = 0x4, fixed_abs, tag = 'smem constant byte address 0x4 - core index']
  #allocation1 [shape = 'u32[144,128]{1,0:T(1,128)}', space=vmem, size = 0x12000, scoped, tag = 'internal scratch']
  %s0 = inlined_call_operand.hbm [shape: f32[20], index: 0, kind: input, shape index: {}]
  %s1 = inlined_call_operand.hbm [shape: f32[2,8,128], index: 1, kind: input, shape index: {}]
  %s2 = inlined_call_operand.hbm [shape: f32[1,8,128], index: 2, kind: output, shape index: {}]
  %s3 = sld [smem:[#allocation0]]
  $region26: #{tpu_custom_call.1} parent=0
    _
  %s5 = ssub.s32 1, %s3
  %s6 = scalar_select 0, %s5, %s3
  $region1: #{tpu_custom_call.1} parent=0
    #allocation2 [shape = 'u8[512]{0}', space=smem, size = 0x200, scoped, tag = 'input window, operand 0, single buffered']
    #allocation3 [shape = 's32[1]{0}', space=sflag, size = 0x4, scoped, tag = 'scoped memory for tpu_custom_call.1']
    #allocation4 [shape = 's32[1]{0}', space=sflag, size = 0x4, scoped, tag = 'scoped memory for tpu_custom_call.1']
    #allocation5 [shape = 's32[1]{0}', space=sflag, size = 0x4, scoped, tag = 'scoped memory for tpu_custom_call.1']
    #allocation6 [shape = 'u8[8192]{0}', space=vmem, size = 0x2000, scoped, tag = 'input window, operand 1, single buffered']
    #allocation7 [shape = 'u8[4096]{0}', space=vmem, size = 0x1000, scoped, tag = 'output window, operand 0, single buffered']
    %7 = vsyncpa [#allocation5], 0
    %8 = vsyncpa [#allocation3], 0
    %9 = vsyncpa [#allocation4], 0
    // Predicated region
    $region2: #{tpu_custom_call.1} parent=1 // pred_check
      _
    $region3: #{tpu_custom_call.1} parent=1 // pred_check_branch
      %11 = sbr.rel (0) target = $region5
    $region4: #{tpu_custom_call.1} parent=1 // pred_region
      %s13 = ssub.s32 16, 16
      %14 = vsyncadd [#allocation5], %s13
      %17 = dma.hbm_to_smem %s0, 16, [#allocation2], [#allocation5]
    $region5: #{tpu_custom_call.1} parent=1 // pred_fallthru
      _
    // Predicated region
    $region6: #{tpu_custom_call.1} parent=1 // pred_check
      _
    $region7: #{tpu_custom_call.1} parent=1 // pred_check_branch
      %19 = sbr.rel (0) target = $region9
    $region8: #{tpu_custom_call.1} parent=1 // pred_region
      %s21 = ssub.s32 256, 256
      %22 = vsyncadd [#allocation3], %s21
      %s23 = sshll.u32 [#allocation6], 4
      %s24 = int_to_ptr.vmem [resolvable:$true] %s23
      %29 = dma.hbm_to_vmem [thread:$0]  %s1, 256, %s24, [#allocation3], 128, 128, 8
    $region9: #{tpu_custom_call.1} parent=1 // pred_fallthru
      _
    // Predicated region
    $region10: #{tpu_custom_call.1} parent=1 // pred_check
      _
    $region11: #{tpu_custom_call.1} parent=1 // pred_check_branch
      %31 = sbr.rel (0) target = $region13
    $region12: #{tpu_custom_call.1} parent=1 // pred_region
      %32 = dma.done [#allocation5], 16
    $region13: #{tpu_custom_call.1} parent=1 // pred_fallthru
      _
    // Predicated region
    $region14: #{tpu_custom_call.1} parent=1 // pred_check
      _
    $region15: #{tpu_custom_call.1} parent=1 // pred_check_branch
      %34 = sbr.rel (0) target = $region17
    $region16: #{tpu_custom_call.1} parent=1 // pred_region
      %35 = dma.done [#allocation3], 256
    $region17: #{tpu_custom_call.1} parent=1 // pred_fallthru
      _
    %36 = sfence
    %s37 = smul.u32 0, 1024
    %v38 = vlaneseq
    %v39 = vshrl.u32 %v38, 7
    %v40 = vmul.u32 %v39, 128
    %v41 = vlaneseq
    %v42 = vand.u32 %v41, 127
    %v43 = vadd.s32 %v40, %v42
    %v44 = vld [vmem:[#allocation6] sm:$0xff]
    %s45 = sadd.s32 0, 8
    %s46 = scalar_lea.vmem [#allocation6], %s45
    %v47 = vld [vmem:[%s46] sm:$0xff]
    %s48 = sld [smem:[#allocation2]]
    %s49 = sld [smem:[#allocation2 + $0x4]]
    %s50 = sld [smem:[#allocation2 + $0x8]]
    %s51 = sld [smem:[#allocation2 + $0xc]]
    %s52 = sld [smem:[#allocation2 + $0x10]]
    %v53 = vstv %s48
    %v54 = vsub.f32 %v44, %v53
    %v55 = vstv %s49
    %v56 = vsub.f32 %v47, %v55
    %v57 = vstv %s50
    %v58 = vmul.f32 %v57, %v54
    %v59 = vstv %s51
    %v60 = vmul.f32 %v59, %v56
    %v61 = vadd.f32 %v58, %v60
    %v62 = vstv %s52
    %v63 = vmul.f32 %v61, %v62
    %v64 = vmax.f32 %v63, 0.0
    %v65 = vmin.f32 %v64, 1.0
    %v66 = vmul.f32 %v65, %v57
    %v67 = vsub.f32 %v54, %v66
    %v68 = vmul.f32 %v65, %v59
    %v69 = vsub.f32 %v56, %v68
    %v70 = vmul.f32 %v67, %v67
    %v71 = vmul.f32 %v69, %v69
    %v72 = vadd.f32 %v70, %v71
    %s73 = sld [smem:[#allocation2 + $0x1]]
    %s74 = sld [smem:[#allocation2 + $0x5]]
    %s75 = sld [smem:[#allocation2 + $0x9]]
    %s76 = sld [smem:[#allocation2 + $0xd]]
    %s77 = sld [smem:[#allocation2 + $0x11]]
    %v78 = vstv %s73
    %v79 = vsub.f32 %v44, %v78
    %v80 = vstv %s74
    %v81 = vsub.f32 %v47, %v80
    %v82 = vstv %s75
    %v83 = vmul.f32 %v82, %v79
    %v84 = vstv %s76
    %v85 = vmul.f32 %v84, %v81
    %v86 = vadd.f32 %v83, %v85
    %v87 = vstv %s77
    %v88 = vmul.f32 %v86, %v87
    %v89 = vmax.f32 %v88, 0.0
    %v90 = vmin.f32 %v89, 1.0
    %v91 = vmul.f32 %v90, %v82
    %v92 = vsub.f32 %v79, %v91
    %v93 = vmul.f32 %v90, %v84
    %v94 = vsub.f32 %v81, %v93
    %v95 = vmul.f32 %v92, %v92
    %v96 = vmul.f32 %v94, %v94
    %v97 = vadd.f32 %v95, %v96
    %v98 = vmin.f32 %v72, %v97
    %s99 = sld [smem:[#allocation2 + $0x2]]
    %s100 = sld [smem:[#allocation2 + $0x6]]
    %s101 = sld [smem:[#allocation2 + $0xa]]
    %s102 = sld [smem:[#allocation2 + $0xe]]
    %s103 = sld [smem:[#allocation2 + $0x12]]
    %v104 = vstv %s99
    %v105 = vsub.f32 %v44, %v104
    %v106 = vstv %s100
    %v107 = vsub.f32 %v47, %v106
    %v108 = vstv %s101
    %v109 = vmul.f32 %v108, %v105
    %v110 = vstv %s102
    %v111 = vmul.f32 %v110, %v107
    %v112 = vadd.f32 %v109, %v111
    %v113 = vstv %s103
    %v114 = vmul.f32 %v112, %v113
    %v115 = vmax.f32 %v114, 0.0
    %v116 = vmin.f32 %v115, 1.0
    %v117 = vmul.f32 %v116, %v108
    %v118 = vsub.f32 %v105, %v117
    %v119 = vmul.f32 %v116, %v110
    %v120 = vsub.f32 %v107, %v119
    %v121 = vmul.f32 %v118, %v118
    %v122 = vmul.f32 %v120, %v120
    %v123 = vadd.f32 %v121, %v122
    %v124 = vmin.f32 %v98, %v123
    %s125 = sld [smem:[#allocation2 + $0x3]]
    %s126 = sld [smem:[#allocation2 + $0x7]]
    %s127 = sld [smem:[#allocation2 + $0xb]]
    %s128 = sld [smem:[#allocation2 + $0xf]]
    %s129 = sld [smem:[#allocation2 + $0x13]]
    %v130 = vstv %s125
    %v131 = vsub.f32 %v44, %v130
    %v132 = vstv %s126
    %v133 = vsub.f32 %v47, %v132
    %v134 = vstv %s127
    %v135 = vmul.f32 %v134, %v131
    %v136 = vstv %s128
    %v137 = vmul.f32 %v136, %v133
    %v138 = vadd.f32 %v135, %v137
    %v139 = vstv %s129
    %v140 = vmul.f32 %v138, %v139
    %v141 = vmax.f32 %v140, 0.0
    %v142 = vmin.f32 %v141, 1.0
    %v143 = vmul.f32 %v142, %v134
    %v144 = vsub.f32 %v131, %v143
    %v145 = vmul.f32 %v142, %v136
    %v146 = vsub.f32 %v133, %v145
    %v147 = vmul.f32 %v144, %v144
    %v148 = vmul.f32 %v146, %v146
    %v149 = vadd.f32 %v147, %v148
    %v150 = vmin.f32 %v124, %v149
    %s151 = smul.u32 0, 128
    %s152 = sadd.s32 %s37, %s151
    %s153 = ssub.s32 200, %s152
    %v154 = vstv %s153
    %vm155 = vcmp.lt.s32.totalorder %v43, %v154
    %v156 = vrsqrt.pop %v150
    %v157 = vmul.f32 %v150, %v156
    %vm158 = vcmp.eq.f32.partialorder %v150, inf
    %v159 = vsel %vm158, %v150, %v157
    %vm160 = vcmp.eq.f32.partialorder %v150, 0.0
    %v161 = vand.u32 %v150, 2147483648
    %v162 = vsel %vm160, %v161, %v159
    %v163 = vsel %vm155, %v162, 0.0
    %v164 = vadd.f32 %v163, 0.0
    %v165 = vadd.f32 %v164, 0.0
    %166 = vst [vmem:[#allocation7] sm:$0xff] %v165
    // Predicated region
    $region18: #{tpu_custom_call.1} parent=1 // pred_check
      _
    $region19: #{tpu_custom_call.1} parent=1 // pred_check_branch
      %168 = sbr.rel (0) target = $region21
    $region20: #{tpu_custom_call.1} parent=1 // pred_region
      %s170 = ssub.s32 128, 128
      %171 = vsyncadd [#allocation4], %s170
      %s173 = sshll.u32 [#allocation7], 4
      %s174 = int_to_ptr.vmem [resolvable:$true] %s173
      %176 = dma.vmem_to_hbm [thread:$0]  %s174, 128, %s2, [#allocation4]
    $region21: #{tpu_custom_call.1} parent=1 // pred_fallthru
      _
    // Predicated region
    $region22: #{tpu_custom_call.1} parent=1 // pred_check
      _
    $region23: #{tpu_custom_call.1} parent=1 // pred_check_branch
      %178 = sbr.rel (0) target = $region25
    $region24: #{tpu_custom_call.1} parent=1 // pred_region
      %179 = dma.done [#allocation4], 128
    $region25: #{tpu_custom_call.1} parent=1 // pred_fallthru
      _
    %180 = vsyncpa [#allocation3], 1
    %181 = vsyncpa [#allocation4], 1
    %182 = vsyncpa [#allocation5], 1

</llo_original>
